<compile_context>
chip_gen: v7x
topology: tpu7x:2x2x1
jax: 0.10.0
libtpu: 0.0.40
codegen_flags: <defaults>
</compile_context>

<pallas_src>
import functools

import jax
import jax.numpy as jnp
from jax.experimental import pallas as pl
from jax.experimental.pallas import tpu as pltpu


def _round_up(x, m):
    return (x + m - 1) // m * m


def _resrnn_kernel(x_ref, wi_ref, b_ref, wh_ref, out_ref,
                   h0_sc, hstart_sc, *opt_ht,
                   res_depth, t_blk, lag, n_chains, mm_dtype):
    """One grid step = one (t_blk, b_blk) block of the recurrence.

    x_ref  : (t_blk, b_blk, I)   raw inputs (mm_dtype)
    wi_ref : (I, Hp)             input weight (mm_dtype)
    b_ref  : (1, Hp)             bi + bh (f32)
    wh_ref : (Hp, Hp)            recurrent weight (mm_dtype)
    out_ref: (t_blk, b_blk, Hp)  pre-activation hn per step
    scratch: h0, hstart[, ht]    recurrent f32 state carried across time blocks
    """
    ht_sc = opt_ht[0] if opt_ht else None     # dropped entirely when res_depth == 1
    b_blk, hp = h0_sc.shape
    in_dim = x_ref.shape[-1]
    cb = b_blk // n_chains                    # rows per independent chain

    tb = pl.program_id(1)                     # time-block index ("arbitrary" axis)
    i_base = tb * t_blk

    # Reset state at the start of each batch block's time sweep.
    @pl.when(tb == 0)
    def _():
        h0_sc[...] = jnp.zeros_like(h0_sc)
        hstart_sc[...] = jnp.zeros_like(hstart_sc)
        if ht_sc is not None:
            ht_sc[...] = jnp.zeros_like(ht_sc)

    # Fused input projection: ONE (t_blk*b_blk, I) x (I, Hp) MXU matmul per
    # block, off the serial recurrence chain (no xw HBM round-trip).
    xw = jnp.dot(x_ref[...].reshape(t_blk * b_blk, in_dim), wi_ref[...],
                 preferred_element_type=jnp.float32) + b_ref[...]

    wh = wh_ref[...]                               # already mm_dtype (cast in wrapper)
    zero = jnp.zeros((cb, hp), jnp.float32)        # hoisted; JAX won't CSE broadcasts

    # Carry the state in registers as n_chains independent batch sub-chains so
    # the scheduler can interleave their matmul->tanh->select latency chains.
    h0 = [h0_sc[c * cb:(c + 1) * cb, :] for c in range(n_chains)]
    hstart = [hstart_sc[c * cb:(c + 1) * cb, :] for c in range(n_chains)]
    ht = ([ht_sc[c * cb:(c + 1) * cb, :] for c in range(n_chains)]
          if ht_sc is not None else None)

    # If t_blk % res_depth == 0 then i % res_depth == t % res_depth is a
    # compile-time constant per unrolled step (the wrapper arranges this
    # whenever res_depth <= t_blk); otherwise fall back to a dynamic predicate.
    static_mod = res_depth > 1 and (t_blk % res_depth == 0)

    # NOTE invariant: padded time steps (i >= lag) still run state updates;
    # harmless only because time is the innermost grid axis so they execute
    # after all real steps, and their output rows are sliced off in the wrapper.
    for t in range(t_blk):
        i = i_base + t                             # global step (dynamic scalar)
        is_lag_m2 = i == (lag - 2)                 # never fires if lag < 2 (like torch)
        if res_depth > 1 and not static_mod:
            hit_res = jnp.logical_and(jnp.logical_not(is_lag_m2),
                                      (i % res_depth) == 0)

        for c in range(n_chains):
            r0 = t * b_blk + c * cb
            hn = xw[r0:r0 + cb, :] + jnp.dot(h0[c].astype(mm_dtype), wh,
                                             preferred_element_type=jnp.float32)
            out_ref[t, c * cb:(c + 1) * cb, :] = hn.astype(out_ref.dtype)

            # Branch priority of the PyTorch code:
            #   i == 0 > i == lag-2 > resDepth == 1 > i % resDepth == 0 > else
            if res_depth == 1:
                addend = jnp.where(is_lag_m2, hstart[c], h0[c])
                new_ht = None
            elif static_mod:
                if t % res_depth == 0:             # compile-time constant branch
                    addend = jnp.where(is_lag_m2, hstart[c], ht[c])
                    new_ht = jnp.where(is_lag_m2, ht[c], hn)
                else:
                    addend = jnp.where(is_lag_m2, hstart[c], zero)
                    new_ht = ht[c]
            else:                                  # dynamic i % res_depth fallback
                addend = jnp.where(is_lag_m2, hstart[c],
                                   jnp.where(hit_res, ht[c], zero))
                new_ht = jnp.where(hit_res, hn, ht[c])
            new_h0 = jnp.tanh(hn + addend)

            if t == 0:
                is_step0 = tb == 0                 # i == 0 only reachable here
                h0[c] = jnp.where(is_step0, h0[c], new_h0)     # h0 unchanged at i==0
                hstart[c] = jnp.where(is_step0, hn, hstart[c])
                if ht is not None:
                    ht[c] = jnp.where(is_step0, ht[c], new_ht)
            else:
                h0[c] = new_h0
                if ht is not None:
                    ht[c] = new_ht

    # Spill the carried state once per block.
    for c in range(n_chains):
        h0_sc[c * cb:(c + 1) * cb, :] = h0[c]
        hstart_sc[c * cb:(c + 1) * cb, :] = hstart[c]
        if ht is not None:
            ht_sc[c * cb:(c + 1) * cb, :] = ht[c]


def resrnn_forward(x_bti, Wi, bi, Wh, bh, *, res_depth,
                   t_blk=8, b_blk=None, n_chains=None,
                   mm_dtype=jnp.float32, out_dtype=jnp.float32):
    """x_bti: (B, T, inputDim).  Returns (T, B, hiddenNum) in out_dtype.

    Weights are stored transposed vs. torch.nn.Linear: Wi (inputDim, H),
    Wh (H, H), so the math is x @ Wi + bi + h0 @ Wh + bh.
    mm_dtype=bfloat16 halves the MXU passes of both matmuls on v5e/v6e/v7x
    (f32 accumulation kept; agreement with an f32 reference loosens to ~1e-2);
    out_dtype=bfloat16 halves the HBM writeback and the out VMEM buffers.
    """
    B, T, I = x_bti.shape
    H = Wh.shape[0]
    assert Wi.shape == (I, H) and Wh.shape == (H, H)
    assert bi.shape == (H,) and bh.shape == (H,)

    # ---- TPU-friendly padded sizes (padded lanes/rows stay exactly zero) ----
    Hp = _round_up(H, 128)               # lane-dense output stores, full MXU columns
    t_blk = max(1, min(t_blk, T))
    if 1 < res_depth <= t_blk:           # make i % res_depth static per unrolled step
        t_blk = _round_up(t_blk, res_depth)
    Tp = _round_up(T, t_blk)

    Bp0 = _round_up(B, 8)
    if b_blk is None:                    # >=2 batch blocks -> megacore / v7x 2-TC sharding
        b_blk = Bp0 // 2 if Bp0 >= 16 else Bp0
    b_blk = min(_round_up(b_blk, 8), Bp0)
    Bp = _round_up(B, b_blk)

    if n_chains is None:
        n_chains = 2                     # interleave 2 independent latency chains
    while n_chains > 1 and b_blk % (8 * n_chains) != 0:
        n_chains -= 1

    # ---- Pad + layout inputs (x is small: I << Hp; no xw materialization) ----
    x_tbi = jnp.transpose(x_bti.astype(jnp.float32), (1, 0, 2))
    x_p = jnp.pad(x_tbi, ((0, Tp - T), (0, Bp - B), (0, 0))).astype(mm_dtype)
    Wi_p = jnp.pad(Wi.astype(jnp.float32), ((0, 0), (0, Hp - H))).astype(mm_dtype)
    Wh_p = jnp.pad(Wh.astype(jnp.float32), ((0, Hp - H), (0, Hp - H))).astype(mm_dtype)
    b_p = jnp.pad((bi + bh).astype(jnp.float32), (0, Hp - H)).reshape(1, Hp)

    kernel = functools.partial(_resrnn_kernel, res_depth=res_depth, t_blk=t_blk,
                               lag=T, n_chains=n_chains, mm_dtype=mm_dtype)

    scratch = [pltpu.VMEM((b_blk, Hp), jnp.float32),    # h0
               pltpu.VMEM((b_blk, Hp), jnp.float32)]    # hstart
    if res_depth != 1:
        scratch.append(pltpu.VMEM((b_blk, Hp), jnp.float32))   # ht

    # Explicit VMEM budget sized from the blocks (default scoped limits would
    # silently cap t_blk / b_blk long before physical VMEM).
    mmb = jnp.dtype(mm_dtype).itemsize
    outb = jnp.dtype(out_dtype).itemsize
    est = (2 * t_blk * b_blk * I * mmb                   # x double buffer
           + 2 * t_blk * b_blk * Hp * outb               # out double buffer
           + 2 * (I * Hp + Hp * Hp) * mmb + 2 * Hp * 4   # Wi / Wh / bias buffers
           + len(scratch) * b_blk * Hp * 4)              # state scratch
    vmem_limit = int(min(max(32 * 2**20, 1.5 * est), 128 * 2**20))

    out_p = pl.pallas_call(
        kernel,
        out_shape=jax.ShapeDtypeStruct((Tp, Bp, Hp), out_dtype),
        grid=(Bp // b_blk, Tp // t_blk),
        in_specs=[
            pl.BlockSpec((t_blk, b_blk, I), lambda b, t: (t, b, 0)),   # x block
            pl.BlockSpec((I, Hp), lambda b, t: (0, 0)),                # Wi (constant)
            pl.BlockSpec((1, Hp), lambda b, t: (0, 0)),                # bi + bh
            pl.BlockSpec((Hp, Hp), lambda b, t: (0, 0)),               # Wh (constant)
        ],
        out_specs=pl.BlockSpec((t_blk, b_blk, Hp), lambda b, t: (t, b, 0)),
        scratch_shapes=scratch,
        compiler_params=pltpu.CompilerParams(
            dimension_semantics=("parallel", "arbitrary"),
            vmem_limit_bytes=vmem_limit),
    )(x_p, Wi_p, b_p, Wh_p)

    return out_p[:T, :B, :H]


def resrnn_reference(x_bti, Wi, bi, Wh, bh, *, res_depth):
    """Pure-JAX replica of the PyTorch forward (for correctness check)."""
    B, T, I = x_bti.shape
    H = Wh.shape[0]
    h0 = jnp.zeros((B, H), jnp.float32)
    ht = h0
    hstart = None
    outs = []
    for i in range(T):
        hn = x_bti[:, i, :] @ Wi + bi + h0 @ Wh + bh
        if i == 0:
            hstart = hn
        elif i == T - 2:
            h0 = jnp.tanh(hn + hstart)
        elif res_depth == 1:
            h0 = jnp.tanh(hn + h0)
        elif i % res_depth == 0:
            h0 = jnp.tanh(hn + ht)
            ht = hn
        else:
            h0 = jnp.tanh(hn)
        outs.append(hn)
    return jnp.stack(outs, 0)


if __name__ == "__main__":
    # Small, forward-consistent shapes.
    B, T = 4, 8            # batch, lag (sequence length)
    inputDim, hiddenNum = 8, 32
    resDepth = 3

    key = jax.random.PRNGKey(0)
    kx, kwi, kbi, kwh, kbh = jax.random.split(key, 5)

    x = jax.random.normal(kx, (B, T, inputDim), dtype=jnp.float32)
    # Deterministic synthetic parameters (Linear weights stored transposed).
    Wi = jax.random.normal(kwi, (inputDim, hiddenNum), dtype=jnp.float32) * 0.2
    bi = jax.random.normal(kbi, (hiddenNum,), dtype=jnp.float32) * 0.1
    Wh = jax.random.normal(kwh, (hiddenNum, hiddenNum), dtype=jnp.float32) * 0.2
    bh = jax.random.normal(kbh, (hiddenNum,), dtype=jnp.float32) * 0.1

    out = resrnn_forward(x, Wi, bi, Wh, bh, res_depth=resDepth, t_blk=8)
    out = jax.block_until_ready(out)
    ref = resrnn_reference(x, Wi, bi, Wh, bh, res_depth=resDepth)
    assert out.shape == (T, B, hiddenNum)
    assert jnp.allclose(out, ref, atol=1e-5, rtol=1e-5), "mismatch (resDepth=3)"

    # resDepth == 1 path (ht scratch dropped) + state carry across time blocks.
    out1 = resrnn_forward(x, Wi, bi, Wh, bh, res_depth=1, t_blk=4)
    ref1 = resrnn_reference(x, Wi, bi, Wh, bh, res_depth=1)
    assert jnp.allclose(jax.block_until_ready(out1), ref1, atol=1e-5, rtol=1e-5), \
        "mismatch (resDepth=1)"

    # resDepth > t_blk exercises the dynamic i % resDepth fallback path.
    out5 = resrnn_forward(x, Wi, bi, Wh, bh, res_depth=5, t_blk=4)
    ref5 = resrnn_reference(x, Wi, bi, Wh, bh, res_depth=5)
    assert jnp.allclose(jax.block_until_ready(out5), ref5, atol=1e-5, rtol=1e-5), \
        "mismatch (resDepth=5, dynamic mod)"

    # Larger batch with b_blk=16 exercises the 2-chain interleave path.
    xb = jax.random.normal(kx, (16, T, inputDim), dtype=jnp.float32)
    outb = resrnn_forward(xb, Wi, bi, Wh, bh, res_depth=resDepth, t_blk=8, b_blk=16)
    refb = resrnn_reference(xb, Wi, bi, Wh, bh, res_depth=resDepth)
    assert jnp.allclose(jax.block_until_ready(outb), refb, atol=1e-5, rtol=1e-5), \
        "mismatch (B=16, n_chains=2)"

    print("KERNEL_OK")
</pallas_src>

<mosaic_0001>
module attributes {stable_mosaic.version = 11 : i64} {
  func.func @_resrnn_kernel(%arg0: i32, %arg1: i32, %arg2: memref<9x8x8xf32, #tpu.memory_space<vmem>>, %arg3: memref<8x128xf32, #tpu.memory_space<vmem>>, %arg4: memref<1x128xf32, #tpu.memory_space<vmem>>, %arg5: memref<128x128xf32, #tpu.memory_space<vmem>>, %arg6: memref<9x8x128xf32, #tpu.memory_space<vmem>>, %arg7: memref<8x128xf32, #tpu.memory_space<vmem>>, %arg8: memref<8x128xf32, #tpu.memory_space<vmem>>, %arg9: memref<8x128xf32, #tpu.memory_space<vmem>>) attributes {dimension_semantics = [#tpu.dimension_semantics<parallel>, #tpu.dimension_semantics<arbitrary>], iteration_bounds = array<i64: 1, 1>, scalar_prefetch = 0 : i64, scratch_operands = 3 : i64, tpu.core_type = #tpu.core_type<tc>, window_params = [{transform_indices = @transform_0, window_bounds = array<i64: 9, 8, 8>}, {pipeline_mode = #tpu.pipeline_mode<synchronous>, transform_indices = @transform_1, window_bounds = array<i64: 8, 128>}, {pipeline_mode = #tpu.pipeline_mode<synchronous>, transform_indices = @transform_2, window_bounds = array<i64: 1, 128>}, {pipeline_mode = #tpu.pipeline_mode<synchronous>, transform_indices = @transform_3, window_bounds = array<i64: 128, 128>}, {transform_indices = @transform_4, window_bounds = array<i64: 9, 8, 128>}]} {
    %c9_i32 = arith.constant 9 : i32
    %0 = arith.muli %arg1, %c9_i32 : i32
    %c0_i32 = arith.constant 0 : i32
    %1 = arith.cmpi eq, %arg1, %c0_i32 : i32
    %2 = arith.extui %1 : i1 to i32
    %c0_i32_0 = arith.constant 0 : i32
    %3 = arith.cmpi ne, %2, %c0_i32_0 : i32
    scf.if %3 {
      %cst_61 = arith.constant 0.000000e+00 : f32
      %125 = vector.broadcast %cst_61 : f32 to vector<8x128xf32>
      %c0_62 = arith.constant 0 : index
      %c0_63 = arith.constant 0 : index
      %126 = vector.load %arg7[%c0_62, %c0_63] : memref<8x128xf32, #tpu.memory_space<vmem>>, vector<8x128xf32>
      tpu.vector_store %arg7[%c0_62, %c0_63], %125 {strides = array<i32>} : memref<8x128xf32, #tpu.memory_space<vmem>>, vector<8x128xf32>,
      %cst_64 = arith.constant 0.000000e+00 : f32
      %127 = vector.broadcast %cst_64 : f32 to vector<8x128xf32>
      %c0_65 = arith.constant 0 : index
      %c0_66 = arith.constant 0 : index
      %128 = vector.load %arg8[%c0_65, %c0_66] : memref<8x128xf32, #tpu.memory_space<vmem>>, vector<8x128xf32>
      tpu.vector_store %arg8[%c0_65, %c0_66], %127 {strides = array<i32>} : memref<8x128xf32, #tpu.memory_space<vmem>>, vector<8x128xf32>,
      %cst_67 = arith.constant 0.000000e+00 : f32
      %129 = vector.broadcast %cst_67 : f32 to vector<8x128xf32>
      %c0_68 = arith.constant 0 : index
      %c0_69 = arith.constant 0 : index
      %130 = vector.load %arg9[%c0_68, %c0_69] : memref<8x128xf32, #tpu.memory_space<vmem>>, vector<8x128xf32>
      tpu.vector_store %arg9[%c0_68, %c0_69], %129 {strides = array<i32>} : memref<8x128xf32, #tpu.memory_space<vmem>>, vector<8x128xf32>,
    } else {
    }
    %c0 = arith.constant 0 : index
    %c0_1 = arith.constant 0 : index
    %c0_2 = arith.constant 0 : index
    %4 = vector.load %arg2[%c0, %c0_1, %c0_2] : memref<9x8x8xf32, #tpu.memory_space<vmem>>, vector<9x8x8xf32>
    %5 = vector.shape_cast %4 : vector<9x8x8xf32> to vector<72x8xf32>
    %c0_3 = arith.constant 0 : index
    %c0_4 = arith.constant 0 : index
    %6 = vector.load %arg3[%c0_3, %c0_4] : memref<8x128xf32, #tpu.memory_space<vmem>>, vector<8x128xf32>
    %cst = arith.constant dense<0.000000e+00> : vector<72x128xf32>
    %7 = tpu.matmul %5, %6, %cst {dimension_numbers = #tpu.dot_dimension_numbers<[1], [0], [0], [1], [0, 0, 1, 1], [], []>} : vector<72x8xf32>, vector<8x128xf32>, vector<72x128xf32> -> vector<72x128xf32>
    %c0_5 = arith.constant 0 : index
    %c0_6 = arith.constant 0 : index
    %8 = vector.load %arg4[%c0_5, %c0_6] : memref<1x128xf32, #tpu.memory_space<vmem>>, vector<1x128xf32>
    %9 = vector.broadcast %8 : vector<1x128xf32> to vector<72x128xf32>
    %10 = arith.addf %7, %9 : vector<72x128xf32>
    %c0_7 = arith.constant 0 : index
    %c0_8 = arith.constant 0 : index
    %11 = vector.load %arg5[%c0_7, %c0_8] : memref<128x128xf32, #tpu.memory_space<vmem>>, vector<128x128xf32>
    %cst_9 = arith.constant 0.000000e+00 : f32
    %12 = vector.broadcast %cst_9 : f32 to vector<8x128xf32>
    %c0_10 = arith.constant 0 : index
    %c0_11 = arith.constant 0 : index
    %13 = vector.load %arg7[%c0_10, %c0_11] : memref<8x128xf32, #tpu.memory_space<vmem>>, vector<8x128xf32>
    %c0_12 = arith.constant 0 : index
    %c0_13 = arith.constant 0 : index
    %14 = vector.load %arg8[%c0_12, %c0_13] : memref<8x128xf32, #tpu.memory_space<vmem>>, vector<8x128xf32>
    %c0_14 = arith.constant 0 : index
    %c0_15 = arith.constant 0 : index
    %15 = vector.load %arg9[%c0_14, %c0_15] : memref<8x128xf32, #tpu.memory_space<vmem>>, vector<8x128xf32>
    %c0_i32_16 = arith.constant 0 : i32
    %16 = arith.addi %0, %c0_i32_16 : i32
    %c6_i32 = arith.constant 6 : i32
    %17 = arith.cmpi eq, %16, %c6_i32 : i32
    %18 = vector.extract_strided_slice %10 {offsets = [0, 0], sizes = [8, 128], strides = [1, 1]} : vector<72x128xf32> to vector<8x128xf32>
    %cst_17 = arith.constant dense<0.000000e+00> : vector<8x128xf32>
    %19 = tpu.matmul %13, %11, %cst_17 {dimension_numbers = #tpu.dot_dimension_numbers<[1], [0], [0], [1], [0, 0, 1, 1], [], []>} : vector<8x128xf32>, vector<128x128xf32>, vector<8x128xf32> -> vector<8x128xf32>
    %20 = arith.addf %18, %19 : vector<8x128xf32>
    %c0_18 = arith.constant 0 : index
    %c0_19 = arith.constant 0 : index
    %c0_20 = arith.constant 0 : index
    %21 = vector.load %arg6[%c0_18, %c0_19, %c0_20] : memref<9x8x128xf32, #tpu.memory_space<vmem>>, vector<1x8x128xf32>
    %22 = vector.shape_cast %21 : vector<1x8x128xf32> to vector<8x128xf32>
    %23 = vector.shape_cast %20 : vector<8x128xf32> to vector<1x8x128xf32>
    tpu.vector_store %arg6[%c0_18, %c0_19, %c0_20], %23 {strides = array<i32>} : memref<9x8x128xf32, #tpu.memory_space<vmem>>, vector<1x8x128xf32>,
    %24 = arith.select %17, %14, %15 : vector<8x128xf32>
    %25 = arith.select %17, %15, %20 : vector<8x128xf32>
    %26 = arith.addf %20, %24 : vector<8x128xf32>
    %27 = math.tanh %26 : vector<8x128xf32>
    %c0_i32_21 = arith.constant 0 : i32
    %28 = arith.cmpi eq, %arg1, %c0_i32_21 : i32
    %29 = arith.select %28, %13, %27 : vector<8x128xf32>
    %30 = arith.select %28, %20, %14 : vector<8x128xf32>
    %31 = arith.select %28, %15, %25 : vector<8x128xf32>
    %c1_i32 = arith.constant 1 : i32
    %32 = arith.addi %0, %c1_i32 : i32
    %c6_i32_22 = arith.constant 6 : i32
    %33 = arith.cmpi eq, %32, %c6_i32_22 : i32
    %34 = vector.extract_strided_slice %10 {offsets = [8, 0], sizes = [8, 128], strides = [1, 1]} : vector<72x128xf32> to vector<8x128xf32>
    %cst_23 = arith.constant dense<0.000000e+00> : vector<8x128xf32>
    %35 = tpu.matmul %29, %11, %cst_23 {dimension_numbers = #tpu.dot_dimension_numbers<[1], [0], [0], [1], [0, 0, 1, 1], [], []>} : vector<8x128xf32>, vector<128x128xf32>, vector<8x128xf32> -> vector<8x128xf32>
    %36 = arith.addf %34, %35 : vector<8x128xf32>
    %c1 = arith.constant 1 : index
    %c0_24 = arith.constant 0 : index
    %c0_25 = arith.constant 0 : index
    %37 = vector.load %arg6[%c1, %c0_24, %c0_25] : memref<9x8x128xf32, #tpu.memory_space<vmem>>, vector<1x8x128xf32>
    %38 = vector.shape_cast %37 : vector<1x8x128xf32> to vector<8x128xf32>
    %39 = vector.shape_cast %36 : vector<8x128xf32> to vector<1x8x128xf32>
    tpu.vector_store %arg6[%c1, %c0_24, %c0_25], %39 {strides = array<i32>} : memref<9x8x128xf32, #tpu.memory_space<vmem>>, vector<1x8x128xf32>,
    %40 = arith.select %33, %30, %12 : vector<8x128xf32>
    %41 = arith.addf %36, %40 : vector<8x128xf32>
    %42 = math.tanh %41 : vector<8x128xf32>
    %c2_i32 = arith.constant 2 : i32
    %43 = arith.addi %0, %c2_i32 : i32
    %c6_i32_26 = arith.constant 6 : i32
    %44 = arith.cmpi eq, %43, %c6_i32_26 : i32
    %45 = vector.extract_strided_slice %10 {offsets = [16, 0], sizes = [8, 128], strides = [1, 1]} : vector<72x128xf32> to vector<8x128xf32>
    %cst_27 = arith.constant dense<0.000000e+00> : vector<8x128xf32>
    %46 = tpu.matmul %42, %11, %cst_27 {dimension_numbers = #tpu.dot_dimension_numbers<[1], [0], [0], [1], [0, 0, 1, 1], [], []>} : vector<8x128xf32>, vector<128x128xf32>, vector<8x128xf32> -> vector<8x128xf32>
    %47 = arith.addf %45, %46 : vector<8x128xf32>
    %c2 = arith.constant 2 : index
    %c0_28 = arith.constant 0 : index
    %c0_29 = arith.constant 0 : index
    %48 = vector.load %arg6[%c2, %c0_28, %c0_29] : memref<9x8x128xf32, #tpu.memory_space<vmem>>, vector<1x8x128xf32>
    %49 = vector.shape_cast %48 : vector<1x8x128xf32> to vector<8x128xf32>
    %50 = vector.shape_cast %47 : vector<8x128xf32> to vector<1x8x128xf32>
    tpu.vector_store %arg6[%c2, %c0_28, %c0_29], %50 {strides = array<i32>} : memref<9x8x128xf32, #tpu.memory_space<vmem>>, vector<1x8x128xf32>,
    %51 = arith.select %44, %30, %12 : vector<8x128xf32>
    %52 = arith.addf %47, %51 : vector<8x128xf32>
    %53 = math.tanh %52 : vector<8x128xf32>
    %c3_i32 = arith.constant 3 : i32
    %54 = arith.addi %0, %c3_i32 : i32
    %c6_i32_30 = arith.constant 6 : i32
    %55 = arith.cmpi eq, %54, %c6_i32_30 : i32
    %56 = vector.extract_strided_slice %10 {offsets = [24, 0], sizes = [8, 128], strides = [1, 1]} : vector<72x128xf32> to vector<8x128xf32>
    %cst_31 = arith.constant dense<0.000000e+00> : vector<8x128xf32>
    %57 = tpu.matmul %53, %11, %cst_31 {dimension_numbers = #tpu.dot_dimension_numbers<[1], [0], [0], [1], [0, 0, 1, 1], [], []>} : vector<8x128xf32>, vector<128x128xf32>, vector<8x128xf32> -> vector<8x128xf32>
    %58 = arith.addf %56, %57 : vector<8x128xf32>
    %c3 = arith.constant 3 : index
    %c0_32 = arith.constant 0 : index
    %c0_33 = arith.constant 0 : index
    %59 = vector.load %arg6[%c3, %c0_32, %c0_33] : memref<9x8x128xf32, #tpu.memory_space<vmem>>, vector<1x8x128xf32>
    %60 = vector.shape_cast %59 : vector<1x8x128xf32> to vector<8x128xf32>
    %61 = vector.shape_cast %58 : vector<8x128xf32> to vector<1x8x128xf32>
    tpu.vector_store %arg6[%c3, %c0_32, %c0_33], %61 {strides = array<i32>} : memref<9x8x128xf32, #tpu.memory_space<vmem>>, vector<1x8x128xf32>,
    %62 = arith.select %55, %30, %31 : vector<8x128xf32>
    %63 = arith.select %55, %31, %58 : vector<8x128xf32>
    %64 = arith.addf %58, %62 : vector<8x128xf32>
    %65 = math.tanh %64 : vector<8x128xf32>
    %c4_i32 = arith.constant 4 : i32
    %66 = arith.addi %0, %c4_i32 : i32
    %c6_i32_34 = arith.constant 6 : i32
    %67 = arith.cmpi eq, %66, %c6_i32_34 : i32
    %68 = vector.extract_strided_slice %10 {offsets = [32, 0], sizes = [8, 128], strides = [1, 1]} : vector<72x128xf32> to vector<8x128xf32>
    %cst_35 = arith.constant dense<0.000000e+00> : vector<8x128xf32>
    %69 = tpu.matmul %65, %11, %cst_35 {dimension_numbers = #tpu.dot_dimension_numbers<[1], [0], [0], [1], [0, 0, 1, 1], [], []>} : vector<8x128xf32>, vector<128x128xf32>, vector<8x128xf32> -> vector<8x128xf32>
    %70 = arith.addf %68, %69 : vector<8x128xf32>
    %c4 = arith.constant 4 : index
    %c0_36 = arith.constant 0 : index
    %c0_37 = arith.constant 0 : index
    %71 = vector.load %arg6[%c4, %c0_36, %c0_37] : memref<9x8x128xf32, #tpu.memory_space<vmem>>, vector<1x8x128xf32>
    %72 = vector.shape_cast %71 : vector<1x8x128xf32> to vector<8x128xf32>
    %73 = vector.shape_cast %70 : vector<8x128xf32> to vector<1x8x128xf32>
    tpu.vector_store %arg6[%c4, %c0_36, %c0_37], %73 {strides = array<i32>} : memref<9x8x128xf32, #tpu.memory_space<vmem>>, vector<1x8x128xf32>,
    %74 = arith.select %67, %30, %12 : vector<8x128xf32>
    %75 = arith.addf %70, %74 : vector<8x128xf32>
    %76 = math.tanh %75 : vector<8x128xf32>
    %c5_i32 = arith.constant 5 : i32
    %77 = arith.addi %0, %c5_i32 : i32
    %c6_i32_38 = arith.constant 6 : i32
    %78 = arith.cmpi eq, %77, %c6_i32_38 : i32
    %79 = vector.extract_strided_slice %10 {offsets = [40, 0], sizes = [8, 128], strides = [1, 1]} : vector<72x128xf32> to vector<8x128xf32>
    %cst_39 = arith.constant dense<0.000000e+00> : vector<8x128xf32>
    %80 = tpu.matmul %76, %11, %cst_39 {dimension_numbers = #tpu.dot_dimension_numbers<[1], [0], [0], [1], [0, 0, 1, 1], [], []>} : vector<8x128xf32>, vector<128x128xf32>, vector<8x128xf32> -> vector<8x128xf32>
    %81 = arith.addf %79, %80 : vector<8x128xf32>
    %c5 = arith.constant 5 : index
    %c0_40 = arith.constant 0 : index
    %c0_41 = arith.constant 0 : index
    %82 = vector.load %arg6[%c5, %c0_40, %c0_41] : memref<9x8x128xf32, #tpu.memory_space<vmem>>, vector<1x8x128xf32>
    %83 = vector.shape_cast %82 : vector<1x8x128xf32> to vector<8x128xf32>
    %84 = vector.shape_cast %81 : vector<8x128xf32> to vector<1x8x128xf32>
    tpu.vector_store %arg6[%c5, %c0_40, %c0_41], %84 {strides = array<i32>} : memref<9x8x128xf32, #tpu.memory_space<vmem>>, vector<1x8x128xf32>,
    %85 = arith.select %78, %30, %12 : vector<8x128xf32>
    %86 = arith.addf %81, %85 : vector<8x128xf32>
    %87 = math.tanh %86 : vector<8x128xf32>
    %c6_i32_42 = arith.constant 6 : i32
    %88 = arith.addi %0, %c6_i32_42 : i32
    %c6_i32_43 = arith.constant 6 : i32
    %89 = arith.cmpi eq, %88, %c6_i32_43 : i32
    %90 = vector.extract_strided_slice %10 {offsets = [48, 0], sizes = [8, 128], strides = [1, 1]} : vector<72x128xf32> to vector<8x128xf32>
    %cst_44 = arith.constant dense<0.000000e+00> : vector<8x128xf32>
    %91 = tpu.matmul %87, %11, %cst_44 {dimension_numbers = #tpu.dot_dimension_numbers<[1], [0], [0], [1], [0, 0, 1, 1], [], []>} : vector<8x128xf32>, vector<128x128xf32>, vector<8x128xf32> -> vector<8x128xf32>
    %92 = arith.addf %90, %91 : vector<8x128xf32>
    %c6 = arith.constant 6 : index
    %c0_45 = arith.constant 0 : index
    %c0_46 = arith.constant 0 : index
    %93 = vector.load %arg6[%c6, %c0_45, %c0_46] : memref<9x8x128xf32, #tpu.memory_space<vmem>>, vector<1x8x128xf32>
    %94 = vector.shape_cast %93 : vector<1x8x128xf32> to vector<8x128xf32>
    %95 = vector.shape_cast %92 : vector<8x128xf32> to vector<1x8x128xf32>
    tpu.vector_store %arg6[%c6, %c0_45, %c0_46], %95 {strides = array<i32>} : memref<9x8x128xf32, #tpu.memory_space<vmem>>, vector<1x8x128xf32>,
    %96 = arith.select %89, %30, %63 : vector<8x128xf32>
    %97 = arith.select %89, %63, %92 : vector<8x128xf32>
    %98 = arith.addf %92, %96 : vector<8x128xf32>
    %99 = math.tanh %98 : vector<8x128xf32>
    %c7_i32 = arith.constant 7 : i32
    %100 = arith.addi %0, %c7_i32 : i32
    %c6_i32_47 = arith.constant 6 : i32
    %101 = arith.cmpi eq, %100, %c6_i32_47 : i32
    %102 = vector.extract_strided_slice %10 {offsets = [56, 0], sizes = [8, 128], strides = [1, 1]} : vector<72x128xf32> to vector<8x128xf32>
    %cst_48 = arith.constant dense<0.000000e+00> : vector<8x128xf32>
    %103 = tpu.matmul %99, %11, %cst_48 {dimension_numbers = #tpu.dot_dimension_numbers<[1], [0], [0], [1], [0, 0, 1, 1], [], []>} : vector<8x128xf32>, vector<128x128xf32>, vector<8x128xf32> -> vector<8x128xf32>
    %104 = arith.addf %102, %103 : vector<8x128xf32>
    %c7 = arith.constant 7 : index
    %c0_49 = arith.constant 0 : index
    %c0_50 = arith.constant 0 : index
    %105 = vector.load %arg6[%c7, %c0_49, %c0_50] : memref<9x8x128xf32, #tpu.memory_space<vmem>>, vector<1x8x128xf32>
    %106 = vector.shape_cast %105 : vector<1x8x128xf32> to vector<8x128xf32>
    %107 = vector.shape_cast %104 : vector<8x128xf32> to vector<1x8x128xf32>
    tpu.vector_store %arg6[%c7, %c0_49, %c0_50], %107 {strides = array<i32>} : memref<9x8x128xf32, #tpu.memory_space<vmem>>, vector<1x8x128xf32>,
    %108 = arith.select %101, %30, %12 : vector<8x128xf32>
    %109 = arith.addf %104, %108 : vector<8x128xf32>
    %110 = math.tanh %109 : vector<8x128xf32>
    %c8_i32 = arith.constant 8 : i32
    %111 = arith.addi %0, %c8_i32 : i32
    %c6_i32_51 = arith.constant 6 : i32
    %112 = arith.cmpi eq, %111, %c6_i32_51 : i32
    %113 = vector.extract_strided_slice %10 {offsets = [64, 0], sizes = [8, 128], strides = [1, 1]} : vector<72x128xf32> to vector<8x128xf32>
    %cst_52 = arith.constant dense<0.000000e+00> : vector<8x128xf32>
    %114 = tpu.matmul %110, %11, %cst_52 {dimension_numbers = #tpu.dot_dimension_numbers<[1], [0], [0], [1], [0, 0, 1, 1], [], []>} : vector<8x128xf32>, vector<128x128xf32>, vector<8x128xf32> -> vector<8x128xf32>
    %115 = arith.addf %113, %114 : vector<8x128xf32>
    %c8 = arith.constant 8 : index
    %c0_53 = arith.constant 0 : index
    %c0_54 = arith.constant 0 : index
    %116 = vector.load %arg6[%c8, %c0_53, %c0_54] : memref<9x8x128xf32, #tpu.memory_space<vmem>>, vector<1x8x128xf32>
    %117 = vector.shape_cast %116 : vector<1x8x128xf32> to vector<8x128xf32>
    %118 = vector.shape_cast %115 : vector<8x128xf32> to vector<1x8x128xf32>
    tpu.vector_store %arg6[%c8, %c0_53, %c0_54], %118 {strides = array<i32>} : memref<9x8x128xf32, #tpu.memory_space<vmem>>, vector<1x8x128xf32>,
    %119 = arith.select %112, %30, %12 : vector<8x128xf32>
    %120 = arith.addf %115, %119 : vector<8x128xf32>
    %121 = math.tanh %120 : vector<8x128xf32>
    %c0_55 = arith.constant 0 : index
    %c0_56 = arith.constant 0 : index
    %122 = vector.load %arg7[%c0_55, %c0_56] : memref<8x128xf32, #tpu.memory_space<vmem>>, vector<8x128xf32>
    tpu.vector_store %arg7[%c0_55, %c0_56], %121 {strides = array<i32>} : memref<8x128xf32, #tpu.memory_space<vmem>>, vector<8x128xf32>,
    %c0_57 = arith.constant 0 : index
    %c0_58 = arith.constant 0 : index
    %123 = vector.load %arg8[%c0_57, %c0_58] : memref<8x128xf32, #tpu.memory_space<vmem>>, vector<8x128xf32>
    tpu.vector_store %arg8[%c0_57, %c0_58], %30 {strides = array<i32>} : memref<8x128xf32, #tpu.memory_space<vmem>>, vector<8x128xf32>,
    %c0_59 = arith.constant 0 : index
    %c0_60 = arith.constant 0 : index
    %124 = vector.load %arg9[%c0_59, %c0_60] : memref<8x128xf32, #tpu.memory_space<vmem>>, vector<8x128xf32>
    tpu.vector_store %arg9[%c0_59, %c0_60], %97 {strides = array<i32>} : memref<8x128xf32, #tpu.memory_space<vmem>>, vector<8x128xf32>,
    return
  }
  func.func @transform_0(%arg0: i32, %arg1: i32) -> (i32, i32, i32) {
    %c0_i32 = arith.constant 0 : i32
    %c0_i32_0 = arith.constant 0 : i32
    return %arg1, %arg0, %c0_i32 : i32, i32, i32
  }
  func.func @transform_1(%arg0: i32, %arg1: i32) -> (i32, i32) {
    %c0_i32 = arith.constant 0 : i32
    %c0_i32_0 = arith.constant 0 : i32
    %c0_i32_1 = arith.constant 0 : i32
    return %c0_i32, %c0_i32_0 : i32, i32
  }
  func.func @transform_2(%arg0: i32, %arg1: i32) -> (i32, i32) {
    %c0_i32 = arith.constant 0 : i32
    %c0_i32_0 = arith.constant 0 : i32
    %c0_i32_1 = arith.constant 0 : i32
    return %c0_i32, %c0_i32_0 : i32, i32
  }
  func.func @transform_3(%arg0: i32, %arg1: i32) -> (i32, i32) {
    %c0_i32 = arith.constant 0 : i32
    %c0_i32_0 = arith.constant 0 : i32
    %c0_i32_1 = arith.constant 0 : i32
    return %c0_i32, %c0_i32_0 : i32, i32
  }
  func.func @transform_4(%arg0: i32, %arg1: i32) -> (i32, i32, i32) {
    %c0_i32 = arith.constant 0 : i32
    %c0_i32_0 = arith.constant 0 : i32
    return %arg1, %arg0, %c0_i32 : i32, i32, i32
  }
}

</mosaic_0001>

<llo_original>
// kernel: tpu_custom_call.1
$region0: #{tpu_custom_call.1}
  #allocation0 [shape = 'u32[]', space=smem, size = 0x4, offset = 0x4, fixed_abs, tag = 'smem constant byte address 0x4 - core index']
  #allocation1 [shape = 'u32[144,128]{1,0:T(1,128)}', space=vmem, size = 0x12000, scoped, tag = 'internal scratch']
  #allocation2 [shape = 'f32[8,128]{1,0:T(8,128)}', space=vmem, size = 0x1000, scoped, tag = 'scratch operand']
  #allocation3 [shape = 'f32[8,128]{1,0:T(8,128)}', space=vmem, size = 0x1000, scoped, tag = 'scratch operand']
  #allocation4 [shape = 'f32[8,128]{1,0:T(8,128)}', space=vmem, size = 0x1000, scoped, tag = 'scratch operand']
  %s0 = inlined_call_operand.vmem [shape: f32[9,8,8], index: 0, kind: input, shape index: {}]
  %s1 = inlined_call_operand.vmem [shape: f32[8,128], index: 1, kind: input, shape index: {}]
  %s2 = inlined_call_operand.vmem [shape: f32[1,128], index: 2, kind: input, shape index: {}]
  %s3 = inlined_call_operand.vmem [shape: f32[128,128], index: 3, kind: input, shape index: {}]
  %s4 = inlined_call_operand.hbm [shape: f32[9,8,128], index: 4, kind: output, shape index: {}]
  %s5 = sld [smem:[#allocation0]]
  $region30: #{tpu_custom_call.1} parent=0
    _
  %s7 = ssub.s32 1, %s5
  %s8 = scalar_select 0, %s7, %s5
  $region1: #{tpu_custom_call.1} parent=0
    #allocation5 [shape = 'u8[36864]{0}', space=vmem, size = 0x9000, scoped, tag = 'output window, operand 0, single buffered']
    #allocation6 [shape = 's32[1]{0}', space=sflag, size = 0x4, scoped, tag = 'scoped memory for tpu_custom_call.1']
    %9 = vsyncpa [#allocation6], 0
    // Predicated region
    $region2: #{tpu_custom_call.1} parent=1 // pred_check
      _
    $region3: #{tpu_custom_call.1} parent=1 // pred_check_branch
      %11 = sbr.rel (0) target = $region5
    $region4: #{tpu_custom_call.1} parent=1 // pred_region
      _
    $region5: #{tpu_custom_call.1} parent=1 // pred_fallthru
      _
    // Predicated region
    $region6: #{tpu_custom_call.1} parent=1 // pred_check
      _
    $region7: #{tpu_custom_call.1} parent=1 // pred_check_branch
      %13 = sbr.rel (0) target = $region9
    $region8: #{tpu_custom_call.1} parent=1 // pred_region
      _
    $region9: #{tpu_custom_call.1} parent=1 // pred_fallthru
      _
    // Predicated region
    $region10: #{tpu_custom_call.1} parent=1 // pred_check
      _
    $region11: #{tpu_custom_call.1} parent=1 // pred_check_branch
      %15 = sbr.rel (0) target = $region13
    $region12: #{tpu_custom_call.1} parent=1 // pred_region
      _
    $region13: #{tpu_custom_call.1} parent=1 // pred_fallthru
      _
    // Predicated region
    $region14: #{tpu_custom_call.1} parent=1 // pred_check
      _
    $region15: #{tpu_custom_call.1} parent=1 // pred_check_branch
      %17 = sbr.rel (0) target = $region17
    $region16: #{tpu_custom_call.1} parent=1 // pred_region
      _
    $region17: #{tpu_custom_call.1} parent=1 // pred_fallthru
      _
    %s18 = smul.u32 0, 9
    %p19 = scmp.eq.s32.totalorder 0, 0
    // Predicated region
    $region18: #{tpu_custom_call.1} parent=1 // pred_check
      %p20 = pneg %p19
    $region19: #{tpu_custom_call.1} parent=1 // pred_check_branch
      %22 = sbr.rel (%p20) target = $region21
    $region20: #{tpu_custom_call.1} parent=1 // pred_region
      %23 = vst [vmem:[#allocation2] sm:$0xff] 0.0
      %24 = vst [vmem:[#allocation3] sm:$0xff] 0.0
      %25 = vst [vmem:[#allocation4] sm:$0xff] 0.0
    $region21: #{tpu_custom_call.1} parent=1 // pred_fallthru
      _
    %v26 = vld [vmem:[%s0] sm:$0xff]
    %v27 = vld [vmem:[%s0 + $0x8] sm:$0xff]
    %v28 = vld [vmem:[%s0 + $0x10] sm:$0xff]
    %v29 = vld [vmem:[%s0 + $0x18] sm:$0xff]
    %v30 = vld [vmem:[%s0 + $0x20] sm:$0xff]
    %v31 = vld [vmem:[%s0 + $0x28] sm:$0xff]
    %v32 = vld [vmem:[%s0 + $0x30] sm:$0xff]
    %v33 = vld [vmem:[%s0 + $0x38] sm:$0xff]
    %v34 = vld [vmem:[%s0 + $0x40] sm:$0xff]
    %v35 = vld [vmem:[%s1] sm:$0xff]
    %v36 = vld [vmem:[%s2] sm:$0x1]
    %v38 = vlaneseq
    %v39 = vshrl.u32 %v38, 7
    %v40 = vsub.s32 0, %v39
    %v41 = vrot.slane %v36, %v40
    %vm43 = vcmask 64512
    %v45 = vsel %vm43, %v26, 0
    %v48 = vsel %vm43, %v27, 0
    %v51 = vsel %vm43, %v28, 0
    %v54 = vsel %vm43, %v29, 0
    %v57 = vsel %vm43, %v30, 0
    %v60 = vsel %vm43, %v31, 0
    %v63 = vsel %vm43, %v32, 0
    %v66 = vsel %vm43, %v33, 0
    %v69 = vsel %vm43, %v34, 0
    %71 = vmatprep.subr.mxu0 0.0
    %72 = vmatpush1.msra.mxu0 %v35
    %73 = vmatprep.subr.mxu0 0.0
    %74 = vmatpush1.msra.mxu0 0.0
    %75 = vmatprep.subr.mxu0 0.0
    %76 = vmatpush1.msra.mxu0 0.0
    %77 = vmatprep.subr.mxu0 0.0
    %78 = vmatpush1.msra.mxu0 0.0
    %79 = vmatprep.subr.mxu0 0.0
    %80 = vmatpush1.msra.mxu0 0.0
    %81 = vmatprep.subr.mxu0 0.0
    %82 = vmatpush1.msra.mxu0 0.0
    %83 = vmatprep.subr.mxu0 0.0
    %84 = vmatpush1.msra.mxu0 0.0
    %85 = vmatprep.subr.mxu0 0.0
    %86 = vmatpush1.msra.mxu0 0.0
    %87 = vmatprep.subr.mxu0 0.0
    %88 = vmatpush1.msra.mxu0 0.0
    %89 = vmatprep.subr.mxu0 0.0
    %90 = vmatpush1.msra.mxu0 0.0
    %91 = vmatprep.subr.mxu0 0.0
    %92 = vmatpush1.msra.mxu0 0.0
    %93 = vmatprep.subr.mxu0 0.0
    %94 = vmatpush1.msra.mxu0 0.0
    %95 = vmatprep.subr.mxu0 0.0
    %96 = vmatpush1.msra.mxu0 0.0
    %97 = vmatprep.subr.mxu0 0.0
    %98 = vmatpush1.msra.mxu0 0.0
    %99 = vmatprep.subr.mxu0 0.0
    %100 = vmatpush1.msra.mxu0 0.0
    %101 = vmatprep.subr.mxu0 0.0
    %102 = vmatpush1.msra.mxu0 0.0
    %103 = vmatprep.subr.mxu0 0.0
    %104 = vmatpush1.msra.mxu0 0.0
    %105 = vmatprep.subr.mxu0 0.0
    %106 = vmatpush1.msra.mxu0 0.0
    %107 = vmatprep.subr.mxu0 0.0
    %108 = vmatpush1.msra.mxu0 0.0
    %109 = vmatprep.subr.mxu0 0.0
    %110 = vmatpush1.msra.mxu0 0.0
    %111 = vmatprep.subr.mxu0 0.0
    %112 = vmatpush1.msra.mxu0 0.0
    %113 = vmatprep.subr.mxu0 0.0
    %114 = vmatpush1.msra.mxu0 0.0
    %115 = vmatprep.subr.mxu0 0.0
    %116 = vmatpush1.msra.mxu0 0.0
    %117 = vmatprep.subr.mxu0 0.0
    %118 = vmatpush1.msra.mxu0 0.0
    %119 = vmatprep.subr.mxu0 0.0
    %120 = vmatpush1.msra.mxu0 0.0
    %121 = vmatprep.subr.mxu0 0.0
    %122 = vmatpush1.msra.mxu0 0.0
    %123 = vmatprep.subr.mxu0 0.0
    %124 = vmatpush1.msra.mxu0 0.0
    %125 = vmatprep.subr.mxu0 0.0
    %126 = vmatpush1.msra.mxu0 0.0
    %127 = vmatprep.subr.mxu0 0.0
    %128 = vmatpush1.msra.mxu0 0.0
    %129 = vmatprep.subr.mxu0 0.0
    %130 = vmatpush1.msra.mxu0 0.0
    %131 = vmatprep.subr.mxu0 0.0
    %132 = vmatpush1.msra.mxu0 0.0
    %133 = vmatprep.subr.mxu0 0.0
    %134 = vmatpush1.msra.mxu0 0.0
    %135 = vmatprep.mubr.f32.mxu0 0.0
    %136 = vmatmul.mubr.f32.gmra.mrb[0].mxu0 %v45
    %v137 = vpop.f32.mrb[0].mxu0
    %v138 = vadd.f32 %v41, %v137
    %v139 = vpop.f32.mrb[0].mxu0
    %140 = vmatprep.mubr.f32.mxu0 0.0
    %141 = vmatmul.mubr.f32.gmra.mrb[0].mxu0 %v48
    %v142 = vpop.f32.mrb[0].mxu0
    %v143 = vadd.f32 %v41, %v142
    %v144 = vpop.f32.mrb[0].mxu0
    %145 = vmatprep.mubr.f32.mxu0 0.0
    %146 = vmatmul.mubr.f32.gmra.mrb[0].mxu0 %v51
    %v147 = vpop.f32.mrb[0].mxu0
    %v148 = vadd.f32 %v41, %v147
    %v149 = vpop.f32.mrb[0].mxu0
    %150 = vmatprep.mubr.f32.mxu0 0.0
    %151 = vmatmul.mubr.f32.gmra.mrb[0].mxu0 %v54
    %v152 = vpop.f32.mrb[0].mxu0
    %v153 = vadd.f32 %v41, %v152
    %v154 = vpop.f32.mrb[0].mxu0
    %155 = vmatprep.mubr.f32.mxu0 0.0
    %156 = vmatmul.mubr.f32.gmra.mrb[0].mxu0 %v57
    %v157 = vpop.f32.mrb[0].mxu0
    %v158 = vadd.f32 %v41, %v157
    %v159 = vpop.f32.mrb[0].mxu0
    %160 = vmatprep.mubr.f32.mxu0 0.0
    %161 = vmatmul.mubr.f32.gmra.mrb[0].mxu0 %v60
    %v162 = vpop.f32.mrb[0].mxu0
    %v163 = vadd.f32 %v41, %v162
    %v164 = vpop.f32.mrb[0].mxu0
    %165 = vmatprep.mubr.f32.mxu0 0.0
    %166 = vmatmul.mubr.f32.gmra.mrb[0].mxu0 %v63
    %v167 = vpop.f32.mrb[0].mxu0
    %v168 = vadd.f32 %v41, %v167
    %v169 = vpop.f32.mrb[0].mxu0
    %170 = vmatprep.mubr.f32.mxu0 0.0
    %171 = vmatmul.mubr.f32.gmra.mrb[0].mxu0 %v66
    %v172 = vpop.f32.mrb[0].mxu0
    %v173 = vadd.f32 %v41, %v172
    %v174 = vpop.f32.mrb[0].mxu0
    %175 = vmatprep.mubr.f32.mxu0 0.0
    %176 = vmatmul.mubr.f32.gmra.mrb[0].mxu0 %v69
    %v177 = vpop.f32.mrb[0].mxu0
    %v178 = vadd.f32 %v41, %v177
    %v179 = vpop.f32.mrb[0].mxu0
    %180 = vdwg.mxu0
    %v181 = vld [vmem:[%s3] sm:$0xff]
    %v182 = vld [vmem:[%s3 + $0x8] sm:$0xff]
    %v183 = vld [vmem:[%s3 + $0x10] sm:$0xff]
    %v184 = vld [vmem:[%s3 + $0x18] sm:$0xff]
    %v185 = vld [vmem:[%s3 + $0x20] sm:$0xff]
    %v186 = vld [vmem:[%s3 + $0x28] sm:$0xff]
    %v187 = vld [vmem:[%s3 + $0x30] sm:$0xff]
    %v188 = vld [vmem:[%s3 + $0x38] sm:$0xff]
    %v189 = vld [vmem:[%s3 + $0x40] sm:$0xff]
    %v190 = vld [vmem:[%s3 + $0x48] sm:$0xff]
    %v191 = vld [vmem:[%s3 + $0x50] sm:$0xff]
    %v192 = vld [vmem:[%s3 + $0x58] sm:$0xff]
    %v193 = vld [vmem:[%s3 + $0x60] sm:$0xff]
    %v194 = vld [vmem:[%s3 + $0x68] sm:$0xff]
    %v195 = vld [vmem:[%s3 + $0x70] sm:$0xff]
    %v196 = vld [vmem:[%s3 + $0x78] sm:$0xff]
    %v197 = vld [vmem:[#allocation2] sm:$0xff]
    %v198 = vld [vmem:[#allocation3] sm:$0xff]
    %v199 = vld [vmem:[#allocation4] sm:$0xff]
    %p200 = scmp.eq.s32.totalorder %s18, 6
    %201 = vmatprep.subr.mxu0 0.0
    %202 = vmatpush1.msra.mxu0 %v181
    %203 = vmatprep.subr.mxu0 0.0
    %204 = vmatpush1.msra.mxu0 %v182
    %205 = vmatprep.subr.mxu0 0.0
    %206 = vmatpush1.msra.mxu0 %v183
    %207 = vmatprep.subr.mxu0 0.0
    %208 = vmatpush1.msra.mxu0 %v184
    %209 = vmatprep.subr.mxu0 0.0
    %210 = vmatpush1.msra.mxu0 %v185
    %211 = vmatprep.subr.mxu0 0.0
    %212 = vmatpush1.msra.mxu0 %v186
    %213 = vmatprep.subr.mxu0 0.0
    %214 = vmatpush1.msra.mxu0 %v187
    %215 = vmatprep.subr.mxu0 0.0
    %216 = vmatpush1.msra.mxu0 %v188
    %217 = vmatprep.subr.mxu0 0.0
    %218 = vmatpush1.msra.mxu0 %v189
    %219 = vmatprep.subr.mxu0 0.0
    %220 = vmatpush1.msra.mxu0 %v190
    %221 = vmatprep.subr.mxu0 0.0
    %222 = vmatpush1.msra.mxu0 %v191
    %223 = vmatprep.subr.mxu0 0.0
    %224 = vmatpush1.msra.mxu0 %v192
    %225 = vmatprep.subr.mxu0 0.0
    %226 = vmatpush1.msra.mxu0 %v193
    %227 = vmatprep.subr.mxu0 0.0
    %228 = vmatpush1.msra.mxu0 %v194
    %229 = vmatprep.subr.mxu0 0.0
    %230 = vmatpush1.msra.mxu0 %v195
    %231 = vmatprep.subr.mxu0 0.0
    %232 = vmatpush1.msra.mxu0 %v196
    %233 = vmatprep.subr.mxu0 0.0
    %234 = vmatpush1.msra.mxu0 0.0
    %235 = vmatprep.subr.mxu0 0.0
    %236 = vmatpush1.msra.mxu0 0.0
    %237 = vmatprep.subr.mxu0 0.0
    %238 = vmatpush1.msra.mxu0 0.0
    %239 = vmatprep.subr.mxu0 0.0
    %240 = vmatpush1.msra.mxu0 0.0
    %241 = vmatprep.subr.mxu0 0.0
    %242 = vmatpush1.msra.mxu0 0.0
    %243 = vmatprep.subr.mxu0 0.0
    %244 = vmatpush1.msra.mxu0 0.0
    %245 = vmatprep.subr.mxu0 0.0
    %246 = vmatpush1.msra.mxu0 0.0
    %247 = vmatprep.subr.mxu0 0.0
    %248 = vmatpush1.msra.mxu0 0.0
    %249 = vmatprep.subr.mxu0 0.0
    %250 = vmatpush1.msra.mxu0 0.0
    %251 = vmatprep.subr.mxu0 0.0
    %252 = vmatpush1.msra.mxu0 0.0
    %253 = vmatprep.subr.mxu0 0.0
    %254 = vmatpush1.msra.mxu0 0.0
    %255 = vmatprep.subr.mxu0 0.0
    %256 = vmatpush1.msra.mxu0 0.0
    %257 = vmatprep.subr.mxu0 0.0
    %258 = vmatpush1.msra.mxu0 0.0
    %259 = vmatprep.subr.mxu0 0.0
    %260 = vmatpush1.msra.mxu0 0.0
    %261 = vmatprep.subr.mxu0 0.0
    %262 = vmatpush1.msra.mxu0 0.0
    %263 = vmatprep.subr.mxu0 0.0
    %264 = vmatpush1.msra.mxu0 0.0
    %265 = vmatprep.mubr.f32.mxu0 0.0
    %266 = vmatmul.mubr.f32.gmra.mrb[0].mxu0 %v197
    %v267 = vpop.f32.mrb[0].mxu0
    %v268 = vadd.f32 0.0, %v267
    %v269 = vpop.f32.mrb[0].mxu0
    %270 = vdwg.mxu0
    %v271 = vadd.f32 %v138, %v268
    %272 = vst [vmem:[#allocation5] sm:$0xff] %v271
    %s273 = scalar_select %p200, 1, 0
    %v274 = vstv %s273
    %vm275 = vcmp.eq.s32.totalorder %v274, 1
    %v276 = vsel %vm275, %v198, %v199
    %v277 = vsel %vm275, %v199, %v271
    %v278 = vadd.f32 %v271, %v276
    %v279 = vtanh.pop %v278
    %s280 = scalar_select %p19, 1, 0
    %v281 = vstv %s280
    %vm282 = vcmp.eq.s32.totalorder %v281, 1
    %v283 = vsel %vm282, %v197, %v279
    %v284 = vsel %vm282, %v271, %v198
    %v285 = vsel %vm282, %v199, %v277
    %s286 = sadd.s32 %s18, 1
    %p287 = scmp.eq.s32.totalorder %s286, 6
    %288 = vmatprep.subr.mxu0 0.0
    %289 = vmatpush1.msra.mxu0 %v181
    %290 = vmatprep.subr.mxu0 0.0
    %291 = vmatpush1.msra.mxu0 %v182
    %292 = vmatprep.subr.mxu0 0.0
    %293 = vmatpush1.msra.mxu0 %v183
    %294 = vmatprep.subr.mxu0 0.0
    %295 = vmatpush1.msra.mxu0 %v184
    %296 = vmatprep.subr.mxu0 0.0
    %297 = vmatpush1.msra.mxu0 %v185
    %298 = vmatprep.subr.mxu0 0.0
    %299 = vmatpush1.msra.mxu0 %v186
    %300 = vmatprep.subr.mxu0 0.0
    %301 = vmatpush1.msra.mxu0 %v187
    %302 = vmatprep.subr.mxu0 0.0
    %303 = vmatpush1.msra.mxu0 %v188
    %304 = vmatprep.subr.mxu0 0.0
    %305 = vmatpush1.msra.mxu0 %v189
    %306 = vmatprep.subr.mxu0 0.0
    %307 = vmatpush1.msra.mxu0 %v190
    %308 = vmatprep.subr.mxu0 0.0
    %309 = vmatpush1.msra.mxu0 %v191
    %310 = vmatprep.subr.mxu0 0.0
    %311 = vmatpush1.msra.mxu0 %v192
    %312 = vmatprep.subr.mxu0 0.0
    %313 = vmatpush1.msra.mxu0 %v193
    %314 = vmatprep.subr.mxu0 0.0
    %315 = vmatpush1.msra.mxu0 %v194
    %316 = vmatprep.subr.mxu0 0.0
    %317 = vmatpush1.msra.mxu0 %v195
    %318 = vmatprep.subr.mxu0 0.0
    %319 = vmatpush1.msra.mxu0 %v196
    %320 = vmatprep.subr.mxu0 0.0
    %321 = vmatpush1.msra.mxu0 0.0
    %322 = vmatprep.subr.mxu0 0.0
    %323 = vmatpush1.msra.mxu0 0.0
    %324 = vmatprep.subr.mxu0 0.0
    %325 = vmatpush1.msra.mxu0 0.0
    %326 = vmatprep.subr.mxu0 0.0
    %327 = vmatpush1.msra.mxu0 0.0
    %328 = vmatprep.subr.mxu0 0.0
    %329 = vmatpush1.msra.mxu0 0.0
    %330 = vmatprep.subr.mxu0 0.0
    %331 = vmatpush1.msra.mxu0 0.0
    %332 = vmatprep.subr.mxu0 0.0
    %333 = vmatpush1.msra.mxu0 0.0
    %334 = vmatprep.subr.mxu0 0.0
    %335 = vmatpush1.msra.mxu0 0.0
    %336 = vmatprep.subr.mxu0 0.0
    %337 = vmatpush1.msra.mxu0 0.0
    %338 = vmatprep.subr.mxu0 0.0
    %339 = vmatpush1.msra.mxu0 0.0
    %340 = vmatprep.subr.mxu0 0.0
    %341 = vmatpush1.msra.mxu0 0.0
    %342 = vmatprep.subr.mxu0 0.0
    %343 = vmatpush1.msra.mxu0 0.0
    %344 = vmatprep.subr.mxu0 0.0
    %345 = vmatpush1.msra.mxu0 0.0
    %346 = vmatprep.subr.mxu0 0.0
    %347 = vmatpush1.msra.mxu0 0.0
    %348 = vmatprep.subr.mxu0 0.0
    %349 = vmatpush1.msra.mxu0 0.0
    %350 = vmatprep.subr.mxu0 0.0
    %351 = vmatpush1.msra.mxu0 0.0
    %352 = vmatprep.mubr.f32.mxu0 0.0
    %353 = vmatmul.mubr.f32.gmra.mrb[0].mxu0 %v283
    %v354 = vpop.f32.mrb[0].mxu0
    %v355 = vadd.f32 0.0, %v354
    %v356 = vpop.f32.mrb[0].mxu0
    %357 = vdwg.mxu0
    %v358 = vadd.f32 %v143, %v355
    %s359 = scalar_lea.vmem [#allocation5], 8
    %360 = vst [vmem:[%s359] sm:$0xff] %v358
    %s361 = scalar_select %p287, 1, 0
    %v362 = vstv %s361
    %vm363 = vcmp.eq.s32.totalorder %v362, 1
    %v364 = vsel %vm363, %v284, 0.0
    %v365 = vadd.f32 %v358, %v364
    %v366 = vtanh.pop %v365
    %s367 = sadd.s32 %s18, 2
    %p368 = scmp.eq.s32.totalorder %s367, 6
    %369 = vmatprep.subr.mxu0 0.0
    %370 = vmatpush1.msra.mxu0 %v181
    %371 = vmatprep.subr.mxu0 0.0
    %372 = vmatpush1.msra.mxu0 %v182
    %373 = vmatprep.subr.mxu0 0.0
    %374 = vmatpush1.msra.mxu0 %v183
    %375 = vmatprep.subr.mxu0 0.0
    %376 = vmatpush1.msra.mxu0 %v184
    %377 = vmatprep.subr.mxu0 0.0
    %378 = vmatpush1.msra.mxu0 %v185
    %379 = vmatprep.subr.mxu0 0.0
    %380 = vmatpush1.msra.mxu0 %v186
    %381 = vmatprep.subr.mxu0 0.0
    %382 = vmatpush1.msra.mxu0 %v187
    %383 = vmatprep.subr.mxu0 0.0
    %384 = vmatpush1.msra.mxu0 %v188
    %385 = vmatprep.subr.mxu0 0.0
    %386 = vmatpush1.msra.mxu0 %v189
    %387 = vmatprep.subr.mxu0 0.0
    %388 = vmatpush1.msra.mxu0 %v190
    %389 = vmatprep.subr.mxu0 0.0
    %390 = vmatpush1.msra.mxu0 %v191
    %391 = vmatprep.subr.mxu0 0.0
    %392 = vmatpush1.msra.mxu0 %v192
    %393 = vmatprep.subr.mxu0 0.0
    %394 = vmatpush1.msra.mxu0 %v193
    %395 = vmatprep.subr.mxu0 0.0
    %396 = vmatpush1.msra.mxu0 %v194
    %397 = vmatprep.subr.mxu0 0.0
    %398 = vmatpush1.msra.mxu0 %v195
    %399 = vmatprep.subr.mxu0 0.0
    %400 = vmatpush1.msra.mxu0 %v196
    %401 = vmatprep.subr.mxu0 0.0
    %402 = vmatpush1.msra.mxu0 0.0
    %403 = vmatprep.subr.mxu0 0.0
    %404 = vmatpush1.msra.mxu0 0.0
    %405 = vmatprep.subr.mxu0 0.0
    %406 = vmatpush1.msra.mxu0 0.0
    %407 = vmatprep.subr.mxu0 0.0
    %408 = vmatpush1.msra.mxu0 0.0
    %409 = vmatprep.subr.mxu0 0.0
    %410 = vmatpush1.msra.mxu0 0.0
    %411 = vmatprep.subr.mxu0 0.0
    %412 = vmatpush1.msra.mxu0 0.0
    %413 = vmatprep.subr.mxu0 0.0
    %414 = vmatpush1.msra.mxu0 0.0
    %415 = vmatprep.subr.mxu0 0.0
    %416 = vmatpush1.msra.mxu0 0.0
    %417 = vmatprep.subr.mxu0 0.0
    %418 = vmatpush1.msra.mxu0 0.0
    %419 = vmatprep.subr.mxu0 0.0
    %420 = vmatpush1.msra.mxu0 0.0
    %421 = vmatprep.subr.mxu0 0.0
    %422 = vmatpush1.msra.mxu0 0.0
    %423 = vmatprep.subr.mxu0 0.0
    %424 = vmatpush1.msra.mxu0 0.0
    %425 = vmatprep.subr.mxu0 0.0
    %426 = vmatpush1.msra.mxu0 0.0
    %427 = vmatprep.subr.mxu0 0.0
    %428 = vmatpush1.msra.mxu0 0.0
    %429 = vmatprep.subr.mxu0 0.0
    %430 = vmatpush1.msra.mxu0 0.0
    %431 = vmatprep.subr.mxu0 0.0
    %432 = vmatpush1.msra.mxu0 0.0
    %433 = vmatprep.mubr.f32.mxu0 0.0
    %434 = vmatmul.mubr.f32.gmra.mrb[0].mxu0 %v366
    %v435 = vpop.f32.mrb[0].mxu0
    %v436 = vadd.f32 0.0, %v435
    %v437 = vpop.f32.mrb[0].mxu0
    %438 = vdwg.mxu0
    %v439 = vadd.f32 %v148, %v436
    %s440 = scalar_lea.vmem [#allocation5], 16
    %441 = vst [vmem:[%s440] sm:$0xff] %v439
    %s442 = scalar_select %p368, 1, 0
    %v443 = vstv %s442
    %vm444 = vcmp.eq.s32.totalorder %v443, 1
    %v445 = vsel %vm444, %v284, 0.0
    %v446 = vadd.f32 %v439, %v445
    %v447 = vtanh.pop %v446
    %s448 = sadd.s32 %s18, 3
    %p449 = scmp.eq.s32.totalorder %s448, 6
    %450 = vmatprep.subr.mxu0 0.0
    %451 = vmatpush1.msra.mxu0 %v181
    %452 = vmatprep.subr.mxu0 0.0
    %453 = vmatpush1.msra.mxu0 %v182
    %454 = vmatprep.subr.mxu0 0.0
    %455 = vmatpush1.msra.mxu0 %v183
    %456 = vmatprep.subr.mxu0 0.0
    %457 = vmatpush1.msra.mxu0 %v184
    %458 = vmatprep.subr.mxu0 0.0
    %459 = vmatpush1.msra.mxu0 %v185
    %460 = vmatprep.subr.mxu0 0.0
    %461 = vmatpush1.msra.mxu0 %v186
    %462 = vmatprep.subr.mxu0 0.0
    %463 = vmatpush1.msra.mxu0 %v187
    %464 = vmatprep.subr.mxu0 0.0
    %465 = vmatpush1.msra.mxu0 %v188
    %466 = vmatprep.subr.mxu0 0.0
    %467 = vmatpush1.msra.mxu0 %v189
    %468 = vmatprep.subr.mxu0 0.0
    %469 = vmatpush1.msra.mxu0 %v190
    %470 = vmatprep.subr.mxu0 0.0
    %471 = vmatpush1.msra.mxu0 %v191
    %472 = vmatprep.subr.mxu0 0.0
    %473 = vmatpush1.msra.mxu0 %v192
    %474 = vmatprep.subr.mxu0 0.0
    %475 = vmatpush1.msra.mxu0 %v193
    %476 = vmatprep.subr.mxu0 0.0
    %477 = vmatpush1.msra.mxu0 %v194
    %478 = vmatprep.subr.mxu0 0.0
    %479 = vmatpush1.msra.mxu0 %v195
    %480 = vmatprep.subr.mxu0 0.0
    %481 = vmatpush1.msra.mxu0 %v196
    %482 = vmatprep.subr.mxu0 0.0
    %483 = vmatpush1.msra.mxu0 0.0
    %484 = vmatprep.subr.mxu0 0.0
    %485 = vmatpush1.msra.mxu0 0.0
    %486 = vmatprep.subr.mxu0 0.0
    %487 = vmatpush1.msra.mxu0 0.0
    %488 = vmatprep.subr.mxu0 0.0
    %489 = vmatpush1.msra.mxu0 0.0
    %490 = vmatprep.subr.mxu0 0.0
    %491 = vmatpush1.msra.mxu0 0.0
    %492 = vmatprep.subr.mxu0 0.0
    %493 = vmatpush1.msra.mxu0 0.0
    %494 = vmatprep.subr.mxu0 0.0
    %495 = vmatpush1.msra.mxu0 0.0
    %496 = vmatprep.subr.mxu0 0.0
    %497 = vmatpush1.msra.mxu0 0.0
    %498 = vmatprep.subr.mxu0 0.0
    %499 = vmatpush1.msra.mxu0 0.0
    %500 = vmatprep.subr.mxu0 0.0
    %501 = vmatpush1.msra.mxu0 0.0
    %502 = vmatprep.subr.mxu0 0.0
    %503 = vmatpush1.msra.mxu0 0.0
    %504 = vmatprep.subr.mxu0 0.0
    %505 = vmatpush1.msra.mxu0 0.0
    %506 = vmatprep.subr.mxu0 0.0
    %507 = vmatpush1.msra.mxu0 0.0
    %508 = vmatprep.subr.mxu0 0.0
    %509 = vmatpush1.msra.mxu0 0.0
    %510 = vmatprep.subr.mxu0 0.0
    %511 = vmatpush1.msra.mxu0 0.0
    %512 = vmatprep.subr.mxu0 0.0
    %513 = vmatpush1.msra.mxu0 0.0
    %514 = vmatprep.mubr.f32.mxu0 0.0
    %515 = vmatmul.mubr.f32.gmra.mrb[0].mxu0 %v447
    %v516 = vpop.f32.mrb[0].mxu0
    %v517 = vadd.f32 0.0, %v516
    %v518 = vpop.f32.mrb[0].mxu0
    %519 = vdwg.mxu0
    %v520 = vadd.f32 %v153, %v517
    %s521 = scalar_lea.vmem [#allocation5], 24
    %522 = vst [vmem:[%s521] sm:$0xff] %v520
    %s523 = scalar_select %p449, 1, 0
    %v524 = vstv %s523
    %vm525 = vcmp.eq.s32.totalorder %v524, 1
    %v526 = vsel %vm525, %v284, %v285
    %v527 = vsel %vm525, %v285, %v520
    %v528 = vadd.f32 %v520, %v526
    %v529 = vtanh.pop %v528
    %s530 = sadd.s32 %s18, 4
    %p531 = scmp.eq.s32.totalorder %s530, 6
    %532 = vmatprep.subr.mxu0 0.0
    %533 = vmatpush1.msra.mxu0 %v181
    %534 = vmatprep.subr.mxu0 0.0
    %535 = vmatpush1.msra.mxu0 %v182
    %536 = vmatprep.subr.mxu0 0.0
    %537 = vmatpush1.msra.mxu0 %v183
    %538 = vmatprep.subr.mxu0 0.0
    %539 = vmatpush1.msra.mxu0 %v184
    %540 = vmatprep.subr.mxu0 0.0
    %541 = vmatpush1.msra.mxu0 %v185
    %542 = vmatprep.subr.mxu0 0.0
    %543 = vmatpush1.msra.mxu0 %v186
    %544 = vmatprep.subr.mxu0 0.0
    %545 = vmatpush1.msra.mxu0 %v187
    %546 = vmatprep.subr.mxu0 0.0
    %547 = vmatpush1.msra.mxu0 %v188
    %548 = vmatprep.subr.mxu0 0.0
    %549 = vmatpush1.msra.mxu0 %v189
    %550 = vmatprep.subr.mxu0 0.0
    %551 = vmatpush1.msra.mxu0 %v190
    %552 = vmatprep.subr.mxu0 0.0
    %553 = vmatpush1.msra.mxu0 %v191
    %554 = vmatprep.subr.mxu0 0.0
    %555 = vmatpush1.msra.mxu0 %v192
    %556 = vmatprep.subr.mxu0 0.0
    %557 = vmatpush1.msra.mxu0 %v193
    %558 = vmatprep.subr.mxu0 0.0
    %559 = vmatpush1.msra.mxu0 %v194
    %560 = vmatprep.subr.mxu0 0.0
    %561 = vmatpush1.msra.mxu0 %v195
    %562 = vmatprep.subr.mxu0 0.0
    %563 = vmatpush1.msra.mxu0 %v196
    %564 = vmatprep.subr.mxu0 0.0
    %565 = vmatpush1.msra.mxu0 0.0
    %566 = vmatprep.subr.mxu0 0.0
    %567 = vmatpush1.msra.mxu0 0.0
    %568 = vmatprep.subr.mxu0 0.0
    %569 = vmatpush1.msra.mxu0 0.0
    %570 = vmatprep.subr.mxu0 0.0
    %571 = vmatpush1.msra.mxu0 0.0
    %572 = vmatprep.subr.mxu0 0.0
    %573 = vmatpush1.msra.mxu0 0.0
    %574 = vmatprep.subr.mxu0 0.0
    %575 = vmatpush1.msra.mxu0 0.0
    %576 = vmatprep.subr.mxu0 0.0
    %577 = vmatpush1.msra.mxu0 0.0
    %578 = vmatprep.subr.mxu0 0.0
    %579 = vmatpush1.msra.mxu0 0.0
    %580 = vmatprep.subr.mxu0 0.0
    %581 = vmatpush1.msra.mxu0 0.0
    %582 = vmatprep.subr.mxu0 0.0
    %583 = vmatpush1.msra.mxu0 0.0
    %584 = vmatprep.subr.mxu0 0.0
    %585 = vmatpush1.msra.mxu0 0.0
    %586 = vmatprep.subr.mxu0 0.0
    %587 = vmatpush1.msra.mxu0 0.0
    %588 = vmatprep.subr.mxu0 0.0
    %589 = vmatpush1.msra.mxu0 0.0
    %590 = vmatprep.subr.mxu0 0.0
    %591 = vmatpush1.msra.mxu0 0.0
    %592 = vmatprep.subr.mxu0 0.0
    %593 = vmatpush1.msra.mxu0 0.0
    %594 = vmatprep.subr.mxu0 0.0
    %595 = vmatpush1.msra.mxu0 0.0
    %596 = vmatprep.mubr.f32.mxu0 0.0
    %597 = vmatmul.mubr.f32.gmra.mrb[0].mxu0 %v529
    %v598 = vpop.f32.mrb[0].mxu0
    %v599 = vadd.f32 0.0, %v598
    %v600 = vpop.f32.mrb[0].mxu0
    %601 = vdwg.mxu0
    %v602 = vadd.f32 %v158, %v599
    %s603 = scalar_lea.vmem [#allocation5], 32
    %604 = vst [vmem:[%s603] sm:$0xff] %v602
    %s605 = scalar_select %p531, 1, 0
    %v606 = vstv %s605
    %vm607 = vcmp.eq.s32.totalorder %v606, 1
    %v608 = vsel %vm607, %v284, 0.0
    %v609 = vadd.f32 %v602, %v608
    %v610 = vtanh.pop %v609
    %s611 = sadd.s32 %s18, 5
    %p612 = scmp.eq.s32.totalorder %s611, 6
    %613 = vmatprep.subr.mxu0 0.0
    %614 = vmatpush1.msra.mxu0 %v181
    %615 = vmatprep.subr.mxu0 0.0
    %616 = vmatpush1.msra.mxu0 %v182
    %617 = vmatprep.subr.mxu0 0.0
    %618 = vmatpush1.msra.mxu0 %v183
    %619 = vmatprep.subr.mxu0 0.0
    %620 = vmatpush1.msra.mxu0 %v184
    %621 = vmatprep.subr.mxu0 0.0
    %622 = vmatpush1.msra.mxu0 %v185
    %623 = vmatprep.subr.mxu0 0.0
    %624 = vmatpush1.msra.mxu0 %v186
    %625 = vmatprep.subr.mxu0 0.0
    %626 = vmatpush1.msra.mxu0 %v187
    %627 = vmatprep.subr.mxu0 0.0
    %628 = vmatpush1.msra.mxu0 %v188
    %629 = vmatprep.subr.mxu0 0.0
    %630 = vmatpush1.msra.mxu0 %v189
    %631 = vmatprep.subr.mxu0 0.0
    %632 = vmatpush1.msra.mxu0 %v190
    %633 = vmatprep.subr.mxu0 0.0
    %634 = vmatpush1.msra.mxu0 %v191
    %635 = vmatprep.subr.mxu0 0.0
    %636 = vmatpush1.msra.mxu0 %v192
    %637 = vmatprep.subr.mxu0 0.0
    %638 = vmatpush1.msra.mxu0 %v193
    %639 = vmatprep.subr.mxu0 0.0
    %640 = vmatpush1.msra.mxu0 %v194
    %641 = vmatprep.subr.mxu0 0.0
    %642 = vmatpush1.msra.mxu0 %v195
    %643 = vmatprep.subr.mxu0 0.0
    %644 = vmatpush1.msra.mxu0 %v196
    %645 = vmatprep.subr.mxu0 0.0
    %646 = vmatpush1.msra.mxu0 0.0
    %647 = vmatprep.subr.mxu0 0.0
    %648 = vmatpush1.msra.mxu0 0.0
    %649 = vmatprep.subr.mxu0 0.0
    %650 = vmatpush1.msra.mxu0 0.0
    %651 = vmatprep.subr.mxu0 0.0
    %652 = vmatpush1.msra.mxu0 0.0
    %653 = vmatprep.subr.mxu0 0.0
    %654 = vmatpush1.msra.mxu0 0.0
    %655 = vmatprep.subr.mxu0 0.0
    %656 = vmatpush1.msra.mxu0 0.0
    %657 = vmatprep.subr.mxu0 0.0
    %658 = vmatpush1.msra.mxu0 0.0
    %659 = vmatprep.subr.mxu0 0.0
    %660 = vmatpush1.msra.mxu0 0.0
    %661 = vmatprep.subr.mxu0 0.0
    %662 = vmatpush1.msra.mxu0 0.0
    %663 = vmatprep.subr.mxu0 0.0
    %664 = vmatpush1.msra.mxu0 0.0
    %665 = vmatprep.subr.mxu0 0.0
    %666 = vmatpush1.msra.mxu0 0.0
    %667 = vmatprep.subr.mxu0 0.0
    %668 = vmatpush1.msra.mxu0 0.0
    %669 = vmatprep.subr.mxu0 0.0
    %670 = vmatpush1.msra.mxu0 0.0
    %671 = vmatprep.subr.mxu0 0.0
    %672 = vmatpush1.msra.mxu0 0.0
    %673 = vmatprep.subr.mxu0 0.0
    %674 = vmatpush1.msra.mxu0 0.0
    %675 = vmatprep.subr.mxu0 0.0
    %676 = vmatpush1.msra.mxu0 0.0
    %677 = vmatprep.mubr.f32.mxu0 0.0
    %678 = vmatmul.mubr.f32.gmra.mrb[0].mxu0 %v610
    %v679 = vpop.f32.mrb[0].mxu0
    %v680 = vadd.f32 0.0, %v679
    %v681 = vpop.f32.mrb[0].mxu0
    %682 = vdwg.mxu0
    %v683 = vadd.f32 %v163, %v680
    %s684 = scalar_lea.vmem [#allocation5], 40
    %685 = vst [vmem:[%s684] sm:$0xff] %v683
    %s686 = scalar_select %p612, 1, 0
    %v687 = vstv %s686
    %vm688 = vcmp.eq.s32.totalorder %v687, 1
    %v689 = vsel %vm688, %v284, 0.0
    %v690 = vadd.f32 %v683, %v689
    %v691 = vtanh.pop %v690
    %s692 = sadd.s32 %s18, 6
    %p693 = scmp.eq.s32.totalorder %s692, 6
    %694 = vmatprep.subr.mxu0 0.0
    %695 = vmatpush1.msra.mxu0 %v181
    %696 = vmatprep.subr.mxu0 0.0
    %697 = vmatpush1.msra.mxu0 %v182
    %698 = vmatprep.subr.mxu0 0.0
    %699 = vmatpush1.msra.mxu0 %v183
    %700 = vmatprep.subr.mxu0 0.0
    %701 = vmatpush1.msra.mxu0 %v184
    %702 = vmatprep.subr.mxu0 0.0
    %703 = vmatpush1.msra.mxu0 %v185
    %704 = vmatprep.subr.mxu0 0.0
    %705 = vmatpush1.msra.mxu0 %v186
    %706 = vmatprep.subr.mxu0 0.0
    %707 = vmatpush1.msra.mxu0 %v187
    %708 = vmatprep.subr.mxu0 0.0
    %709 = vmatpush1.msra.mxu0 %v188
    %710 = vmatprep.subr.mxu0 0.0
    %711 = vmatpush1.msra.mxu0 %v189
    %712 = vmatprep.subr.mxu0 0.0
    %713 = vmatpush1.msra.mxu0 %v190
    %714 = vmatprep.subr.mxu0 0.0
    %715 = vmatpush1.msra.mxu0 %v191
    %716 = vmatprep.subr.mxu0 0.0
    %717 = vmatpush1.msra.mxu0 %v192
    %718 = vmatprep.subr.mxu0 0.0
    %719 = vmatpush1.msra.mxu0 %v193
    %720 = vmatprep.subr.mxu0 0.0
    %721 = vmatpush1.msra.mxu0 %v194
    %722 = vmatprep.subr.mxu0 0.0
    %723 = vmatpush1.msra.mxu0 %v195
    %724 = vmatprep.subr.mxu0 0.0
    %725 = vmatpush1.msra.mxu0 %v196
    %726 = vmatprep.subr.mxu0 0.0
    %727 = vmatpush1.msra.mxu0 0.0
    %728 = vmatprep.subr.mxu0 0.0
    %729 = vmatpush1.msra.mxu0 0.0
    %730 = vmatprep.subr.mxu0 0.0
    %731 = vmatpush1.msra.mxu0 0.0
    %732 = vmatprep.subr.mxu0 0.0
    %733 = vmatpush1.msra.mxu0 0.0
    %734 = vmatprep.subr.mxu0 0.0
    %735 = vmatpush1.msra.mxu0 0.0
    %736 = vmatprep.subr.mxu0 0.0
    %737 = vmatpush1.msra.mxu0 0.0
    %738 = vmatprep.subr.mxu0 0.0
    %739 = vmatpush1.msra.mxu0 0.0
    %740 = vmatprep.subr.mxu0 0.0
    %741 = vmatpush1.msra.mxu0 0.0
    %742 = vmatprep.subr.mxu0 0.0
    %743 = vmatpush1.msra.mxu0 0.0
    %744 = vmatprep.subr.mxu0 0.0
    %745 = vmatpush1.msra.mxu0 0.0
    %746 = vmatprep.subr.mxu0 0.0
    %747 = vmatpush1.msra.mxu0 0.0
    %748 = vmatprep.subr.mxu0 0.0
    %749 = vmatpush1.msra.mxu0 0.0
    %750 = vmatprep.subr.mxu0 0.0
    %751 = vmatpush1.msra.mxu0 0.0
    %752 = vmatprep.subr.mxu0 0.0
    %753 = vmatpush1.msra.mxu0 0.0
    %754 = vmatprep.subr.mxu0 0.0
    %755 = vmatpush1.msra.mxu0 0.0
    %756 = vmatprep.subr.mxu0 0.0
    %757 = vmatpush1.msra.mxu0 0.0
    %758 = vmatprep.mubr.f32.mxu0 0.0
    %759 = vmatmul.mubr.f32.gmra.mrb[0].mxu0 %v691
    %v760 = vpop.f32.mrb[0].mxu0
    %v761 = vadd.f32 0.0, %v760
    %v762 = vpop.f32.mrb[0].mxu0
    %763 = vdwg.mxu0
    %v764 = vadd.f32 %v168, %v761
    %s765 = scalar_lea.vmem [#allocation5], 48
    %766 = vst [vmem:[%s765] sm:$0xff] %v764
    %s767 = scalar_select %p693, 1, 0
    %v768 = vstv %s767
    %vm769 = vcmp.eq.s32.totalorder %v768, 1
    %v770 = vsel %vm769, %v284, %v527
    %v771 = vsel %vm769, %v527, %v764
    %v772 = vadd.f32 %v764, %v770
    %v773 = vtanh.pop %v772
    %s774 = sadd.s32 %s18, 7
    %p775 = scmp.eq.s32.totalorder %s774, 6
    %776 = vmatprep.subr.mxu0 0.0
    %777 = vmatpush1.msra.mxu0 %v181
    %778 = vmatprep.subr.mxu0 0.0
    %779 = vmatpush1.msra.mxu0 %v182
    %780 = vmatprep.subr.mxu0 0.0
    %781 = vmatpush1.msra.mxu0 %v183
    %782 = vmatprep.subr.mxu0 0.0
    %783 = vmatpush1.msra.mxu0 %v184
    %784 = vmatprep.subr.mxu0 0.0
    %785 = vmatpush1.msra.mxu0 %v185
    %786 = vmatprep.subr.mxu0 0.0
    %787 = vmatpush1.msra.mxu0 %v186
    %788 = vmatprep.subr.mxu0 0.0
    %789 = vmatpush1.msra.mxu0 %v187
    %790 = vmatprep.subr.mxu0 0.0
    %791 = vmatpush1.msra.mxu0 %v188
    %792 = vmatprep.subr.mxu0 0.0
    %793 = vmatpush1.msra.mxu0 %v189
    %794 = vmatprep.subr.mxu0 0.0
    %795 = vmatpush1.msra.mxu0 %v190
    %796 = vmatprep.subr.mxu0 0.0
    %797 = vmatpush1.msra.mxu0 %v191
    %798 = vmatprep.subr.mxu0 0.0
    %799 = vmatpush1.msra.mxu0 %v192
    %800 = vmatprep.subr.mxu0 0.0
    %801 = vmatpush1.msra.mxu0 %v193
    %802 = vmatprep.subr.mxu0 0.0
    %803 = vmatpush1.msra.mxu0 %v194
    %804 = vmatprep.subr.mxu0 0.0
    %805 = vmatpush1.msra.mxu0 %v195
    %806 = vmatprep.subr.mxu0 0.0
    %807 = vmatpush1.msra.mxu0 %v196
    %808 = vmatprep.subr.mxu0 0.0
    %809 = vmatpush1.msra.mxu0 0.0
    %810 = vmatprep.subr.mxu0 0.0
    %811 = vmatpush1.msra.mxu0 0.0
    %812 = vmatprep.subr.mxu0 0.0
    %813 = vmatpush1.msra.mxu0 0.0
    %814 = vmatprep.subr.mxu0 0.0
    %815 = vmatpush1.msra.mxu0 0.0
    %816 = vmatprep.subr.mxu0 0.0
    %817 = vmatpush1.msra.mxu0 0.0
    %818 = vmatprep.subr.mxu0 0.0
    %819 = vmatpush1.msra.mxu0 0.0
    %820 = vmatprep.subr.mxu0 0.0
    %821 = vmatpush1.msra.mxu0 0.0
    %822 = vmatprep.subr.mxu0 0.0
    %823 = vmatpush1.msra.mxu0 0.0
    %824 = vmatprep.subr.mxu0 0.0
    %825 = vmatpush1.msra.mxu0 0.0
    %826 = vmatprep.subr.mxu0 0.0
    %827 = vmatpush1.msra.mxu0 0.0
    %828 = vmatprep.subr.mxu0 0.0
    %829 = vmatpush1.msra.mxu0 0.0
    %830 = vmatprep.subr.mxu0 0.0
    %831 = vmatpush1.msra.mxu0 0.0
    %832 = vmatprep.subr.mxu0 0.0
    %833 = vmatpush1.msra.mxu0 0.0
    %834 = vmatprep.subr.mxu0 0.0
    %835 = vmatpush1.msra.mxu0 0.0
    %836 = vmatprep.subr.mxu0 0.0
    %837 = vmatpush1.msra.mxu0 0.0
    %838 = vmatprep.subr.mxu0 0.0
    %839 = vmatpush1.msra.mxu0 0.0
    %840 = vmatprep.mubr.f32.mxu0 0.0
    %841 = vmatmul.mubr.f32.gmra.mrb[0].mxu0 %v773
    %v842 = vpop.f32.mrb[0].mxu0
    %v843 = vadd.f32 0.0, %v842
    %v844 = vpop.f32.mrb[0].mxu0
    %845 = vdwg.mxu0
    %v846 = vadd.f32 %v173, %v843
    %s847 = scalar_lea.vmem [#allocation5], 56
    %848 = vst [vmem:[%s847] sm:$0xff] %v846
    %s849 = scalar_select %p775, 1, 0
    %v850 = vstv %s849
    %vm851 = vcmp.eq.s32.totalorder %v850, 1
    %v852 = vsel %vm851, %v284, 0.0
    %v853 = vadd.f32 %v846, %v852
    %v854 = vtanh.pop %v853
    %s855 = sadd.s32 %s18, 8
    %p856 = scmp.eq.s32.totalorder %s855, 6
    %857 = vmatprep.subr.mxu0 0.0
    %858 = vmatpush1.msra.mxu0 %v181
    %859 = vmatprep.subr.mxu0 0.0
    %860 = vmatpush1.msra.mxu0 %v182
    %861 = vmatprep.subr.mxu0 0.0
    %862 = vmatpush1.msra.mxu0 %v183
    %863 = vmatprep.subr.mxu0 0.0
    %864 = vmatpush1.msra.mxu0 %v184
    %865 = vmatprep.subr.mxu0 0.0
    %866 = vmatpush1.msra.mxu0 %v185
    %867 = vmatprep.subr.mxu0 0.0
    %868 = vmatpush1.msra.mxu0 %v186
    %869 = vmatprep.subr.mxu0 0.0
    %870 = vmatpush1.msra.mxu0 %v187
    %871 = vmatprep.subr.mxu0 0.0
    %872 = vmatpush1.msra.mxu0 %v188
    %873 = vmatprep.subr.mxu0 0.0
    %874 = vmatpush1.msra.mxu0 %v189
    %875 = vmatprep.subr.mxu0 0.0
    %876 = vmatpush1.msra.mxu0 %v190
    %877 = vmatprep.subr.mxu0 0.0
    %878 = vmatpush1.msra.mxu0 %v191
    %879 = vmatprep.subr.mxu0 0.0
    %880 = vmatpush1.msra.mxu0 %v192
    %881 = vmatprep.subr.mxu0 0.0
    %882 = vmatpush1.msra.mxu0 %v193
    %883 = vmatprep.subr.mxu0 0.0
    %884 = vmatpush1.msra.mxu0 %v194
    %885 = vmatprep.subr.mxu0 0.0
    %886 = vmatpush1.msra.mxu0 %v195
    %887 = vmatprep.subr.mxu0 0.0
    %888 = vmatpush1.msra.mxu0 %v196
    %889 = vmatprep.subr.mxu0 0.0
    %890 = vmatpush1.msra.mxu0 0.0
    %891 = vmatprep.subr.mxu0 0.0
    %892 = vmatpush1.msra.mxu0 0.0
    %893 = vmatprep.subr.mxu0 0.0
    %894 = vmatpush1.msra.mxu0 0.0
    %895 = vmatprep.subr.mxu0 0.0
    %896 = vmatpush1.msra.mxu0 0.0
    %897 = vmatprep.subr.mxu0 0.0
    %898 = vmatpush1.msra.mxu0 0.0
    %899 = vmatprep.subr.mxu0 0.0
    %900 = vmatpush1.msra.mxu0 0.0
    %901 = vmatprep.subr.mxu0 0.0
    %902 = vmatpush1.msra.mxu0 0.0
    %903 = vmatprep.subr.mxu0 0.0
    %904 = vmatpush1.msra.mxu0 0.0
    %905 = vmatprep.subr.mxu0 0.0
    %906 = vmatpush1.msra.mxu0 0.0
    %907 = vmatprep.subr.mxu0 0.0
    %908 = vmatpush1.msra.mxu0 0.0
    %909 = vmatprep.subr.mxu0 0.0
    %910 = vmatpush1.msra.mxu0 0.0
    %911 = vmatprep.subr.mxu0 0.0
    %912 = vmatpush1.msra.mxu0 0.0
    %913 = vmatprep.subr.mxu0 0.0
    %914 = vmatpush1.msra.mxu0 0.0
    %915 = vmatprep.subr.mxu0 0.0
    %916 = vmatpush1.msra.mxu0 0.0
    %917 = vmatprep.subr.mxu0 0.0
    %918 = vmatpush1.msra.mxu0 0.0
    %919 = vmatprep.subr.mxu0 0.0
    %920 = vmatpush1.msra.mxu0 0.0
    %921 = vmatprep.mubr.f32.mxu0 0.0
    %922 = vmatmul.mubr.f32.gmra.mrb[0].mxu0 %v854
    %v923 = vpop.f32.mrb[0].mxu0
    %v924 = vadd.f32 0.0, %v923
    %v925 = vpop.f32.mrb[0].mxu0
    %926 = vdwg.mxu0
    %v927 = vadd.f32 %v178, %v924
    %s928 = scalar_lea.vmem [#allocation5], 64
    %929 = vst [vmem:[%s928] sm:$0xff] %v927
    %s930 = scalar_select %p856, 1, 0
    %v931 = vstv %s930
    %vm932 = vcmp.eq.s32.totalorder %v931, 1
    %v933 = vsel %vm932, %v284, 0.0
    %v934 = vadd.f32 %v927, %v933
    %v935 = vtanh.pop %v934
    %936 = vst [vmem:[#allocation2] sm:$0xff] %v935
    %937 = vst [vmem:[#allocation3] sm:$0xff] %v284
    %938 = vst [vmem:[#allocation4] sm:$0xff] %v771
    // Predicated region
    $region22: #{tpu_custom_call.1} parent=1 // pred_check
      _
    $region23: #{tpu_custom_call.1} parent=1 // pred_check_branch
      %940 = sbr.rel (0) target = $region25
    $region24: #{tpu_custom_call.1} parent=1 // pred_region
      %s942 = ssub.s32 1152, 1152
      %943 = vsyncadd [#allocation6], %s942
      %s944 = sshll.u32 [#allocation5], 4
      %s945 = int_to_ptr.vmem [resolvable:$true] %s944
      %950 = dma.vmem_to_hbm [thread:$0]  %s945, 1152, %s4, [#allocation6], 128, 128, 8
    $region25: #{tpu_custom_call.1} parent=1 // pred_fallthru
      _
    // Predicated region
    $region26: #{tpu_custom_call.1} parent=1 // pred_check
      _
    $region27: #{tpu_custom_call.1} parent=1 // pred_check_branch
      %952 = sbr.rel (0) target = $region29
    $region28: #{tpu_custom_call.1} parent=1 // pred_region
      %953 = dma.done [#allocation6], 1152
    $region29: #{tpu_custom_call.1} parent=1 // pred_fallthru
      _
    %954 = vsyncpa [#allocation6], 1

</llo_original>
